<compile_context>
chip_gen: v6e
topology: v6e:2x2x1
jax: 0.10.0
libtpu: 0.0.40
codegen_flags: <defaults>
</compile_context>

<pallas_src>
import functools

import jax
import jax.numpy as jnp
import numpy as np
from jax import lax
from jax.experimental import pallas as pl
from jax.experimental.pallas import tpu as pltpu


def _conv_stats_kernel(xc_ref, w_ref, conv_ref, psum_ref, pssq_ref):
    """Pass 1: per-phase conv matmul (MXU) + per-block BN partial sums.

    xc_ref   : (P2, KKCp, bm)  im2col input block (matmul dtype)
    w_ref    : (Cout, KKCp)    flattened conv weight (matmul dtype)
    conv_ref : (P2, Cout, bm)  f32 conv output block
    psum_ref : (1, Cout, 1)    f32 per-block per-channel sum
    pssq_ref : (1, Cout, 1)    f32 per-block per-channel sum of squares
    """
    p2 = xc_ref.shape[0]
    cout = w_ref.shape[0]
    w = w_ref[...]
    s = jnp.zeros((cout, 1), jnp.float32)
    q = jnp.zeros((cout, 1), jnp.float32)
    for p in range(p2):                                   # unrolled, P2 = pool*pool
        d = jnp.dot(w, xc_ref[p], preferred_element_type=jnp.float32)   # MXU
        conv_ref[p] = d
        s = s + jnp.sum(d, axis=-1, keepdims=True)
        q = q + jnp.sum(d * d, axis=-1, keepdims=True)
    psum_ref[0] = s
    pssq_ref[0] = q


def _bn_relu_pool_kernel(conv_ref, scale_ref, shift_ref, o_ref):
    """Pass 2: folded-BN per-channel affine + ReLU + max over pool phases.

    conv_ref  : (P2, Cout, bm) f32
    scale_ref : (Cout, 1)      f32   gamma * rsqrt(var + eps)
    shift_ref : (Cout, 1)      f32   beta - mean * scale
    o_ref     : (Cout, bm)     f32   lane-dense output slab
    """
    p2 = conv_ref.shape[0]
    sc = scale_ref[...]
    sh = shift_ref[...]
    out = jnp.maximum(conv_ref[0] * sc + sh, 0.0)
    for p in range(1, p2):
        out = jnp.maximum(out, jnp.maximum(conv_ref[p] * sc + sh, 0.0))
    o_ref[...] = out


def conv_block2d(x, weight, bias, gamma, beta, *, pool_size=2, eps=1e-5,
                 conv_stride=1, matmul_dtype=jnp.bfloat16, block_m=512):
    """NCHW in / NCHW out, matching ConvBlock2d.forward (training-mode BN)."""
    del bias  # cancels exactly under training-mode BatchNorm (see header note)
    assert conv_stride == 1, \
        "TODO(synk): conv_stride != 1 not implemented (module default is 1)"
    N, Cin, H, W = x.shape
    Cout, Cin_w, K, K_w = weight.shape
    assert Cin_w == Cin and K_w == K
    pad = K // 2
    pool = 1 if pool_size is None else int(pool_size)
    assert H % pool == 0 and W % pool == 0, \
        "TODO(synk): floor max-pool remainder (H or W not divisible by pool) not supported"

    Ho, Wo = H // pool, W // pool
    P2 = pool * pool
    KKC = K * K * Cin
    KKCp = ((KKC + 7) // 8) * 8            # pad contraction dim to a sublane multiple
    Mp = N * Ho * Wo                       # flattened batch*pooled-spatial (lane axis)
    bm = min(int(block_m), ((Mp + 127) // 128) * 128)
    bm = max(128, (bm // 128) * 128)       # block along lanes, multiple of 128
    Mp_pad = ((Mp + bm - 1) // bm) * bm
    nb = Mp_pad // bm

    # ---- im2col with pool-phase decomposition (built once in the wrapper) ----
    x = x.astype(jnp.float32)
    xp = jnp.pad(x, ((0, 0), (0, 0), (pad, pad), (pad, pad)))
    taps = [xp[:, :, kh:kh + H, kw:kw + W] for kh in range(K) for kw in range(K)]
    col = jnp.stack(taps, axis=2)                       # (N, Cin, K*K, H, W)
    col = col.reshape(N, KKC, H, W)                     # (ci, kh, kw) ordering
    col = col.reshape(N, KKC, Ho, pool, Wo, pool)
    col = col.transpose(3, 5, 1, 0, 2, 4)               # (ph, pw, KKC, N, Ho, Wo)
    x_colT = col.reshape(P2, KKC, Mp)
    x_colT = jnp.pad(x_colT, ((0, 0), (0, KKCp - KKC), (0, Mp_pad - Mp)))
    x_colT = x_colT.astype(matmul_dtype)

    w_mat = weight.reshape(Cout, KKC).astype(jnp.float32)
    w_mat = jnp.pad(w_mat, ((0, 0), (0, KKCp - KKC))).astype(matmul_dtype)

    cparams = pltpu.CompilerParams(
        dimension_semantics=("parallel",),          # both TCs on v7x megacore
        vmem_limit_bytes=32 * 1024 * 1024,          # explicit; fits v5e/v6e/v7x
    )

    # ---- Pass 1: conv (MXU) + per-block BN partial statistics ----
    conv_out, psum, pssq = pl.pallas_call(
        _conv_stats_kernel,
        grid=(nb,),
        in_specs=[
            pl.BlockSpec((P2, KKCp, bm), lambda i: (0, 0, i)),
            pl.BlockSpec((Cout, KKCp), lambda i: (0, 0)),
        ],
        out_specs=[
            pl.BlockSpec((P2, Cout, bm), lambda i: (0, 0, i)),
            pl.BlockSpec((1, Cout, 1), lambda i: (i, 0, 0)),
            pl.BlockSpec((1, Cout, 1), lambda i: (i, 0, 0)),
        ],
        out_shape=[
            jax.ShapeDtypeStruct((P2, Cout, Mp_pad), jnp.float32),
            jax.ShapeDtypeStruct((nb, Cout, 1), jnp.float32),
            jax.ShapeDtypeStruct((nb, Cout, 1), jnp.float32),
        ],
        compiler_params=cparams,
    )(x_colT, w_mat)

    # ---- Fold BN batch statistics into a per-channel affine (tiny XLA ops) ----
    count = jnp.float32(N * H * W)          # true per-channel count (lane padding is zero)
    s = jnp.sum(psum[:, :, 0], axis=0)      # (Cout,)
    q = jnp.sum(pssq[:, :, 0], axis=0)
    mean = s / count
    var = jnp.maximum(q / count - mean * mean, 0.0)
    scale = gamma.astype(jnp.float32) * lax.rsqrt(var + eps)
    shift = beta.astype(jnp.float32) - mean * scale
    scale = scale.reshape(Cout, 1)
    shift = shift.reshape(Cout, 1)

    # ---- Pass 2: affine + ReLU + max-pool over phases (lane-dense output) ----
    out = pl.pallas_call(
        _bn_relu_pool_kernel,
        grid=(nb,),
        in_specs=[
            pl.BlockSpec((P2, Cout, bm), lambda i: (0, 0, i)),
            pl.BlockSpec((Cout, 1), lambda i: (0, 0)),
            pl.BlockSpec((Cout, 1), lambda i: (0, 0)),
        ],
        out_specs=pl.BlockSpec((Cout, bm), lambda i: (0, i)),
        out_shape=jax.ShapeDtypeStruct((Cout, Mp_pad), jnp.float32),
        compiler_params=cparams,
    )(conv_out, scale, shift)

    out = out[:, :Mp].reshape(Cout, N, Ho, Wo)
    return jnp.transpose(out, (1, 0, 2, 3))             # (N, Cout, Ho, Wo)


def reference_numpy(x, weight, bias, gamma, beta, pool, eps):
    """Host float64 reference with identical semantics (NCHW)."""
    x = np.asarray(x, np.float64)
    weight = np.asarray(weight, np.float64)
    bias = np.asarray(bias, np.float64)
    gamma = np.asarray(gamma, np.float64)
    beta = np.asarray(beta, np.float64)
    N, Cin, H, W = x.shape
    Cout, _, K, _ = weight.shape
    pad = K // 2
    xp = np.pad(x, ((0, 0), (0, 0), (pad, pad), (pad, pad)))
    out = np.zeros((N, Cout, H, W), np.float64)
    for kh in range(K):
        for kw in range(K):
            out += np.einsum('nchw,oc->nohw', xp[:, :, kh:kh + H, kw:kw + W],
                             weight[:, :, kh, kw])
    out += bias[None, :, None, None]
    mean = out.mean(axis=(0, 2, 3), keepdims=True)
    var = ((out - mean) ** 2).mean(axis=(0, 2, 3), keepdims=True)
    y = (out - mean) / np.sqrt(var + eps)
    y = y * gamma[None, :, None, None] + beta[None, :, None, None]
    y = np.maximum(y, 0.0)
    Ho, Wo = H // pool, W // pool
    y = y[:, :, :Ho * pool, :Wo * pool].reshape(N, Cout, Ho, pool, Wo, pool)
    return y.max(axis=(3, 5))


if __name__ == "__main__":
    key = jax.random.PRNGKey(0)
    k_x, k_w, k_b = jax.random.split(key, 3)

    # Small shapes consistent with the module: ConvBlock2d(in=4, out=8)
    N, Cin, H, W = 2, 4, 16, 16
    Cout, K, pool_size, eps = 8, 3, 2, 1e-5

    x = jax.random.normal(k_x, (N, Cin, H, W), jnp.float32)

    # Parameter init mirroring the module's __init__ (xavier_uniform conv weight,
    # default conv bias, BN gamma=1 / beta=0).
    fan_in, fan_out = Cin * K * K, Cout * K * K
    xav = float(np.sqrt(6.0 / (fan_in + fan_out)))
    weight = jax.random.uniform(k_w, (Cout, Cin, K, K), jnp.float32, -xav, xav)
    bb = float(1.0 / np.sqrt(fan_in))
    bias = jax.random.uniform(k_b, (Cout,), jnp.float32, -bb, bb)
    gamma = jnp.ones((Cout,), jnp.float32)
    beta = jnp.zeros((Cout,), jnp.float32)

    ref = reference_numpy(x, weight, bias, gamma, beta, pool_size, eps).astype(np.float32)

    # Exact-parity path: f32 matmul operands.
    run_f32 = jax.jit(functools.partial(conv_block2d, pool_size=pool_size, eps=eps,
                                        matmul_dtype=jnp.float32))
    out_f32 = jax.block_until_ready(run_f32(x, weight, bias, gamma, beta))
    assert out_f32.shape == (N, Cout, H // pool_size, W // pool_size), out_f32.shape
    np.testing.assert_allclose(np.asarray(out_f32), ref, atol=5e-3, rtol=5e-3)

    # Full-MXU-rate path (review: bf16 operands / f32 accumulation on v5e/v6e/v7x).
    run_bf16 = jax.jit(functools.partial(conv_block2d, pool_size=pool_size, eps=eps,
                                         matmul_dtype=jnp.bfloat16))
    out_bf16 = jax.block_until_ready(run_bf16(x, weight, bias, gamma, beta))
    assert out_bf16.shape == out_f32.shape
    np.testing.assert_allclose(np.asarray(out_bf16), ref, atol=5e-2, rtol=5e-2)

    print("KERNEL_OK")
</pallas_src>

<mosaic_0001>
module attributes {stable_mosaic.version = 11 : i64} {
  func.func @_conv_stats_kernel(%arg0: i32, %arg1: memref<4x40x128xf32, #tpu.memory_space<vmem>>, %arg2: memref<8x40xf32, #tpu.memory_space<vmem>>, %arg3: memref<4x8x128xf32, #tpu.memory_space<vmem>>, %arg4: memref<1x8x1xf32, #tpu.memory_space<vmem>>, %arg5: memref<1x8x1xf32, #tpu.memory_space<vmem>>) attributes {dimension_semantics = [#tpu.dimension_semantics<parallel>], iteration_bounds = array<i64: 1>, scalar_prefetch = 0 : i64, scratch_operands = 0 : i64, tpu.core_type = #tpu.core_type<tc>, window_params = [{transform_indices = @transform_0, window_bounds = array<i64: 4, 40, 128>}, {pipeline_mode = #tpu.pipeline_mode<synchronous>, transform_indices = @transform_1, window_bounds = array<i64: 8, 40>}, {transform_indices = @transform_2, window_bounds = array<i64: 4, 8, 128>}, {transform_indices = @transform_3, window_bounds = array<i64: 1, 8, 1>}, {transform_indices = @transform_4, window_bounds = array<i64: 1, 8, 1>}]} {
    %c0 = arith.constant 0 : index
    %c0_0 = arith.constant 0 : index
    %0 = vector.load %arg2[%c0, %c0_0] : memref<8x40xf32, #tpu.memory_space<vmem>>, vector<8x40xf32>
    %cst = arith.constant 0.000000e+00 : f32
    %1 = vector.broadcast %cst : f32 to vector<8x1xf32>
    %cst_1 = arith.constant 0.000000e+00 : f32
    %2 = vector.broadcast %cst_1 : f32 to vector<8x1xf32>
    %c0_2 = arith.constant 0 : index
    %c0_3 = arith.constant 0 : index
    %c0_4 = arith.constant 0 : index
    %3 = vector.load %arg1[%c0_2, %c0_3, %c0_4] : memref<4x40x128xf32, #tpu.memory_space<vmem>>, vector<1x40x128xf32>
    %4 = vector.shape_cast %3 : vector<1x40x128xf32> to vector<40x128xf32>
    %cst_5 = arith.constant dense<0.000000e+00> : vector<8x128xf32>
    %5 = tpu.matmul %0, %4, %cst_5 {dimension_numbers = #tpu.dot_dimension_numbers<[1], [0], [0], [1], [0, 0, 1, 1], [], []>} : vector<8x40xf32>, vector<40x128xf32>, vector<8x128xf32> -> vector<8x128xf32>
    %c0_6 = arith.constant 0 : index
    %c0_7 = arith.constant 0 : index
    %c0_8 = arith.constant 0 : index
    %6 = vector.load %arg3[%c0_6, %c0_7, %c0_8] : memref<4x8x128xf32, #tpu.memory_space<vmem>>, vector<1x8x128xf32>
    %7 = vector.shape_cast %6 : vector<1x8x128xf32> to vector<8x128xf32>
    %8 = vector.shape_cast %5 : vector<8x128xf32> to vector<1x8x128xf32>
    tpu.vector_store %arg3[%c0_6, %c0_7, %c0_8], %8 {strides = array<i32>} : memref<4x8x128xf32, #tpu.memory_space<vmem>>, vector<1x8x128xf32>,
    %cst_9 = arith.constant dense<0.000000e+00> : vector<8xf32>
    %9 = vector.multi_reduction <add>, %5, %cst_9 [1] : vector<8x128xf32> to vector<8xf32>
    %10 = vector.shape_cast %9 : vector<8xf32> to vector<8x1xf32>
    %11 = arith.addf %1, %10 : vector<8x1xf32>
    %12 = arith.mulf %5, %5 : vector<8x128xf32>
    %cst_10 = arith.constant dense<0.000000e+00> : vector<8xf32>
    %13 = vector.multi_reduction <add>, %12, %cst_10 [1] : vector<8x128xf32> to vector<8xf32>
    %14 = vector.shape_cast %13 : vector<8xf32> to vector<8x1xf32>
    %15 = arith.addf %2, %14 : vector<8x1xf32>
    %c1 = arith.constant 1 : index
    %c0_11 = arith.constant 0 : index
    %c0_12 = arith.constant 0 : index
    %16 = vector.load %arg1[%c1, %c0_11, %c0_12] : memref<4x40x128xf32, #tpu.memory_space<vmem>>, vector<1x40x128xf32>
    %17 = vector.shape_cast %16 : vector<1x40x128xf32> to vector<40x128xf32>
    %cst_13 = arith.constant dense<0.000000e+00> : vector<8x128xf32>
    %18 = tpu.matmul %0, %17, %cst_13 {dimension_numbers = #tpu.dot_dimension_numbers<[1], [0], [0], [1], [0, 0, 1, 1], [], []>} : vector<8x40xf32>, vector<40x128xf32>, vector<8x128xf32> -> vector<8x128xf32>
    %c1_14 = arith.constant 1 : index
    %c0_15 = arith.constant 0 : index
    %c0_16 = arith.constant 0 : index
    %19 = vector.load %arg3[%c1_14, %c0_15, %c0_16] : memref<4x8x128xf32, #tpu.memory_space<vmem>>, vector<1x8x128xf32>
    %20 = vector.shape_cast %19 : vector<1x8x128xf32> to vector<8x128xf32>
    %21 = vector.shape_cast %18 : vector<8x128xf32> to vector<1x8x128xf32>
    tpu.vector_store %arg3[%c1_14, %c0_15, %c0_16], %21 {strides = array<i32>} : memref<4x8x128xf32, #tpu.memory_space<vmem>>, vector<1x8x128xf32>,
    %cst_17 = arith.constant dense<0.000000e+00> : vector<8xf32>
    %22 = vector.multi_reduction <add>, %18, %cst_17 [1] : vector<8x128xf32> to vector<8xf32>
    %23 = vector.shape_cast %22 : vector<8xf32> to vector<8x1xf32>
    %24 = arith.addf %11, %23 : vector<8x1xf32>
    %25 = arith.mulf %18, %18 : vector<8x128xf32>
    %cst_18 = arith.constant dense<0.000000e+00> : vector<8xf32>
    %26 = vector.multi_reduction <add>, %25, %cst_18 [1] : vector<8x128xf32> to vector<8xf32>
    %27 = vector.shape_cast %26 : vector<8xf32> to vector<8x1xf32>
    %28 = arith.addf %15, %27 : vector<8x1xf32>
    %c2 = arith.constant 2 : index
    %c0_19 = arith.constant 0 : index
    %c0_20 = arith.constant 0 : index
    %29 = vector.load %arg1[%c2, %c0_19, %c0_20] : memref<4x40x128xf32, #tpu.memory_space<vmem>>, vector<1x40x128xf32>
    %30 = vector.shape_cast %29 : vector<1x40x128xf32> to vector<40x128xf32>
    %cst_21 = arith.constant dense<0.000000e+00> : vector<8x128xf32>
    %31 = tpu.matmul %0, %30, %cst_21 {dimension_numbers = #tpu.dot_dimension_numbers<[1], [0], [0], [1], [0, 0, 1, 1], [], []>} : vector<8x40xf32>, vector<40x128xf32>, vector<8x128xf32> -> vector<8x128xf32>
    %c2_22 = arith.constant 2 : index
    %c0_23 = arith.constant 0 : index
    %c0_24 = arith.constant 0 : index
    %32 = vector.load %arg3[%c2_22, %c0_23, %c0_24] : memref<4x8x128xf32, #tpu.memory_space<vmem>>, vector<1x8x128xf32>
    %33 = vector.shape_cast %32 : vector<1x8x128xf32> to vector<8x128xf32>
    %34 = vector.shape_cast %31 : vector<8x128xf32> to vector<1x8x128xf32>
    tpu.vector_store %arg3[%c2_22, %c0_23, %c0_24], %34 {strides = array<i32>} : memref<4x8x128xf32, #tpu.memory_space<vmem>>, vector<1x8x128xf32>,
    %cst_25 = arith.constant dense<0.000000e+00> : vector<8xf32>
    %35 = vector.multi_reduction <add>, %31, %cst_25 [1] : vector<8x128xf32> to vector<8xf32>
    %36 = vector.shape_cast %35 : vector<8xf32> to vector<8x1xf32>
    %37 = arith.addf %24, %36 : vector<8x1xf32>
    %38 = arith.mulf %31, %31 : vector<8x128xf32>
    %cst_26 = arith.constant dense<0.000000e+00> : vector<8xf32>
    %39 = vector.multi_reduction <add>, %38, %cst_26 [1] : vector<8x128xf32> to vector<8xf32>
    %40 = vector.shape_cast %39 : vector<8xf32> to vector<8x1xf32>
    %41 = arith.addf %28, %40 : vector<8x1xf32>
    %c3 = arith.constant 3 : index
    %c0_27 = arith.constant 0 : index
    %c0_28 = arith.constant 0 : index
    %42 = vector.load %arg1[%c3, %c0_27, %c0_28] : memref<4x40x128xf32, #tpu.memory_space<vmem>>, vector<1x40x128xf32>
    %43 = vector.shape_cast %42 : vector<1x40x128xf32> to vector<40x128xf32>
    %cst_29 = arith.constant dense<0.000000e+00> : vector<8x128xf32>
    %44 = tpu.matmul %0, %43, %cst_29 {dimension_numbers = #tpu.dot_dimension_numbers<[1], [0], [0], [1], [0, 0, 1, 1], [], []>} : vector<8x40xf32>, vector<40x128xf32>, vector<8x128xf32> -> vector<8x128xf32>
    %c3_30 = arith.constant 3 : index
    %c0_31 = arith.constant 0 : index
    %c0_32 = arith.constant 0 : index
    %45 = vector.load %arg3[%c3_30, %c0_31, %c0_32] : memref<4x8x128xf32, #tpu.memory_space<vmem>>, vector<1x8x128xf32>
    %46 = vector.shape_cast %45 : vector<1x8x128xf32> to vector<8x128xf32>
    %47 = vector.shape_cast %44 : vector<8x128xf32> to vector<1x8x128xf32>
    tpu.vector_store %arg3[%c3_30, %c0_31, %c0_32], %47 {strides = array<i32>} : memref<4x8x128xf32, #tpu.memory_space<vmem>>, vector<1x8x128xf32>,
    %cst_33 = arith.constant dense<0.000000e+00> : vector<8xf32>
    %48 = vector.multi_reduction <add>, %44, %cst_33 [1] : vector<8x128xf32> to vector<8xf32>
    %49 = vector.shape_cast %48 : vector<8xf32> to vector<8x1xf32>
    %50 = arith.addf %37, %49 : vector<8x1xf32>
    %51 = arith.mulf %44, %44 : vector<8x128xf32>
    %cst_34 = arith.constant dense<0.000000e+00> : vector<8xf32>
    %52 = vector.multi_reduction <add>, %51, %cst_34 [1] : vector<8x128xf32> to vector<8xf32>
    %53 = vector.shape_cast %52 : vector<8xf32> to vector<8x1xf32>
    %54 = arith.addf %41, %53 : vector<8x1xf32>
    %c0_35 = arith.constant 0 : index
    %c0_36 = arith.constant 0 : index
    %c0_37 = arith.constant 0 : index
    %55 = vector.load %arg4[%c0_35, %c0_36, %c0_37] : memref<1x8x1xf32, #tpu.memory_space<vmem>>, vector<1x8x1xf32>
    %56 = vector.shape_cast %55 : vector<1x8x1xf32> to vector<8x1xf32>
    %57 = vector.shape_cast %50 : vector<8x1xf32> to vector<1x8x1xf32>
    tpu.vector_store %arg4[%c0_35, %c0_36, %c0_37], %57 {strides = array<i32>} : memref<1x8x1xf32, #tpu.memory_space<vmem>>, vector<1x8x1xf32>,
    %c0_38 = arith.constant 0 : index
    %c0_39 = arith.constant 0 : index
    %c0_40 = arith.constant 0 : index
    %58 = vector.load %arg5[%c0_38, %c0_39, %c0_40] : memref<1x8x1xf32, #tpu.memory_space<vmem>>, vector<1x8x1xf32>
    %59 = vector.shape_cast %58 : vector<1x8x1xf32> to vector<8x1xf32>
    %60 = vector.shape_cast %54 : vector<8x1xf32> to vector<1x8x1xf32>
    tpu.vector_store %arg5[%c0_38, %c0_39, %c0_40], %60 {strides = array<i32>} : memref<1x8x1xf32, #tpu.memory_space<vmem>>, vector<1x8x1xf32>,
    return
  }
  func.func @transform_0(%arg0: i32) -> (i32, i32, i32) {
    %c0_i32 = arith.constant 0 : i32
    %c0_i32_0 = arith.constant 0 : i32
    %c0_i32_1 = arith.constant 0 : i32
    return %c0_i32, %c0_i32_0, %arg0 : i32, i32, i32
  }
  func.func @transform_1(%arg0: i32) -> (i32, i32) {
    %c0_i32 = arith.constant 0 : i32
    %c0_i32_0 = arith.constant 0 : i32
    %c0_i32_1 = arith.constant 0 : i32
    return %c0_i32, %c0_i32_0 : i32, i32
  }
  func.func @transform_2(%arg0: i32) -> (i32, i32, i32) {
    %c0_i32 = arith.constant 0 : i32
    %c0_i32_0 = arith.constant 0 : i32
    %c0_i32_1 = arith.constant 0 : i32
    return %c0_i32, %c0_i32_0, %arg0 : i32, i32, i32
  }
  func.func @transform_3(%arg0: i32) -> (i32, i32, i32) {
    %c0_i32 = arith.constant 0 : i32
    %c0_i32_0 = arith.constant 0 : i32
    %c0_i32_1 = arith.constant 0 : i32
    return %arg0, %c0_i32, %c0_i32_0 : i32, i32, i32
  }
  func.func @transform_4(%arg0: i32) -> (i32, i32, i32) {
    %c0_i32 = arith.constant 0 : i32
    %c0_i32_0 = arith.constant 0 : i32
    %c0_i32_1 = arith.constant 0 : i32
    return %arg0, %c0_i32, %c0_i32_0 : i32, i32, i32
  }
}

module attributes {stable_mosaic.version = 11 : i64} {
  func.func @_bn_relu_pool_kernel(%arg0: i32, %arg1: memref<4x8x128xf32, #tpu.memory_space<vmem>>, %arg2: memref<8x1xf32, #tpu.memory_space<vmem>>, %arg3: memref<8x1xf32, #tpu.memory_space<vmem>>, %arg4: memref<8x128xf32, #tpu.memory_space<vmem>>) attributes {dimension_semantics = [#tpu.dimension_semantics<parallel>], iteration_bounds = array<i64: 1>, scalar_prefetch = 0 : i64, scratch_operands = 0 : i64, tpu.core_type = #tpu.core_type<tc>, window_params = [{transform_indices = @transform_0, window_bounds = array<i64: 4, 8, 128>}, {pipeline_mode = #tpu.pipeline_mode<synchronous>, transform_indices = @transform_1, window_bounds = array<i64: 8, 1>}, {pipeline_mode = #tpu.pipeline_mode<synchronous>, transform_indices = @transform_2, window_bounds = array<i64: 8, 1>}, {transform_indices = @transform_3, window_bounds = array<i64: 8, 128>}]} {
    %c0 = arith.constant 0 : index
    %c0_0 = arith.constant 0 : index
    %0 = vector.load %arg2[%c0, %c0_0] : memref<8x1xf32, #tpu.memory_space<vmem>>, vector<8x1xf32>
    %c0_1 = arith.constant 0 : index
    %c0_2 = arith.constant 0 : index
    %1 = vector.load %arg3[%c0_1, %c0_2] : memref<8x1xf32, #tpu.memory_space<vmem>>, vector<8x1xf32>
    %c0_3 = arith.constant 0 : index
    %c0_4 = arith.constant 0 : index
    %c0_5 = arith.constant 0 : index
    %2 = vector.load %arg1[%c0_3, %c0_4, %c0_5] : memref<4x8x128xf32, #tpu.memory_space<vmem>>, vector<1x8x128xf32>
    %3 = vector.shape_cast %2 : vector<1x8x128xf32> to vector<8x128xf32>
    %4 = vector.broadcast %0 : vector<8x1xf32> to vector<8x128xf32>
    %5 = arith.mulf %3, %4 : vector<8x128xf32>
    %6 = vector.broadcast %1 : vector<8x1xf32> to vector<8x128xf32>
    %7 = arith.addf %5, %6 : vector<8x128xf32>
    %cst = arith.constant 0.000000e+00 : f32
    %8 = vector.broadcast %cst : f32 to vector<8x128xf32>
    %9 = arith.maximumf %7, %8 : vector<8x128xf32>
    %c1 = arith.constant 1 : index
    %c0_6 = arith.constant 0 : index
    %c0_7 = arith.constant 0 : index
    %10 = vector.load %arg1[%c1, %c0_6, %c0_7] : memref<4x8x128xf32, #tpu.memory_space<vmem>>, vector<1x8x128xf32>
    %11 = vector.shape_cast %10 : vector<1x8x128xf32> to vector<8x128xf32>
    %12 = vector.broadcast %0 : vector<8x1xf32> to vector<8x128xf32>
    %13 = arith.mulf %11, %12 : vector<8x128xf32>
    %14 = vector.broadcast %1 : vector<8x1xf32> to vector<8x128xf32>
    %15 = arith.addf %13, %14 : vector<8x128xf32>
    %cst_8 = arith.constant 0.000000e+00 : f32
    %16 = vector.broadcast %cst_8 : f32 to vector<8x128xf32>
    %17 = arith.maximumf %15, %16 : vector<8x128xf32>
    %18 = arith.maximumf %9, %17 : vector<8x128xf32>
    %c2 = arith.constant 2 : index
    %c0_9 = arith.constant 0 : index
    %c0_10 = arith.constant 0 : index
    %19 = vector.load %arg1[%c2, %c0_9, %c0_10] : memref<4x8x128xf32, #tpu.memory_space<vmem>>, vector<1x8x128xf32>
    %20 = vector.shape_cast %19 : vector<1x8x128xf32> to vector<8x128xf32>
    %21 = vector.broadcast %0 : vector<8x1xf32> to vector<8x128xf32>
    %22 = arith.mulf %20, %21 : vector<8x128xf32>
    %23 = vector.broadcast %1 : vector<8x1xf32> to vector<8x128xf32>
    %24 = arith.addf %22, %23 : vector<8x128xf32>
    %cst_11 = arith.constant 0.000000e+00 : f32
    %25 = vector.broadcast %cst_11 : f32 to vector<8x128xf32>
    %26 = arith.maximumf %24, %25 : vector<8x128xf32>
    %27 = arith.maximumf %18, %26 : vector<8x128xf32>
    %c3 = arith.constant 3 : index
    %c0_12 = arith.constant 0 : index
    %c0_13 = arith.constant 0 : index
    %28 = vector.load %arg1[%c3, %c0_12, %c0_13] : memref<4x8x128xf32, #tpu.memory_space<vmem>>, vector<1x8x128xf32>
    %29 = vector.shape_cast %28 : vector<1x8x128xf32> to vector<8x128xf32>
    %30 = vector.broadcast %0 : vector<8x1xf32> to vector<8x128xf32>
    %31 = arith.mulf %29, %30 : vector<8x128xf32>
    %32 = vector.broadcast %1 : vector<8x1xf32> to vector<8x128xf32>
    %33 = arith.addf %31, %32 : vector<8x128xf32>
    %cst_14 = arith.constant 0.000000e+00 : f32
    %34 = vector.broadcast %cst_14 : f32 to vector<8x128xf32>
    %35 = arith.maximumf %33, %34 : vector<8x128xf32>
    %36 = arith.maximumf %27, %35 : vector<8x128xf32>
    %c0_15 = arith.constant 0 : index
    %c0_16 = arith.constant 0 : index
    %37 = vector.load %arg4[%c0_15, %c0_16] : memref<8x128xf32, #tpu.memory_space<vmem>>, vector<8x128xf32>
    tpu.vector_store %arg4[%c0_15, %c0_16], %36 {strides = array<i32>} : memref<8x128xf32, #tpu.memory_space<vmem>>, vector<8x128xf32>,
    return
  }
  func.func @transform_0(%arg0: i32) -> (i32, i32, i32) {
    %c0_i32 = arith.constant 0 : i32
    %c0_i32_0 = arith.constant 0 : i32
    %c0_i32_1 = arith.constant 0 : i32
    return %c0_i32, %c0_i32_0, %arg0 : i32, i32, i32
  }
  func.func @transform_1(%arg0: i32) -> (i32, i32) {
    %c0_i32 = arith.constant 0 : i32
    %c0_i32_0 = arith.constant 0 : i32
    %c0_i32_1 = arith.constant 0 : i32
    return %c0_i32, %c0_i32_0 : i32, i32
  }
  func.func @transform_2(%arg0: i32) -> (i32, i32) {
    %c0_i32 = arith.constant 0 : i32
    %c0_i32_0 = arith.constant 0 : i32
    %c0_i32_1 = arith.constant 0 : i32
    return %c0_i32, %c0_i32_0 : i32, i32
  }
  func.func @transform_3(%arg0: i32) -> (i32, i32) {
    %c0_i32 = arith.constant 0 : i32
    %c0_i32_0 = arith.constant 0 : i32
    return %c0_i32, %arg0 : i32, i32
  }
}

</mosaic_0001>

<llo_original>
// kernel: conv_block2d.3
$region0: #{conv_block2d.3}
  #allocation0 [shape = 'u32[]', space=smem, size = 0x4, offset = 0x4, fixed_abs, tag = 'smem constant byte address 0x4 - core index']
  #allocation1 [shape = 'u32[144,128]{1,0:T(1,128)}', space=vmem, size = 0x12000, scoped, tag = 'internal scratch']
  %s0 = inlined_call_operand.vmem [shape: f32[4,8,128], index: 0, kind: input, shape index: {}]
  %s1 = inlined_call_operand.vmem [shape: f32[8,1], index: 1, kind: input, shape index: {}]
  %s2 = inlined_call_operand.vmem [shape: f32[8,1], index: 2, kind: input, shape index: {}]
  %s3 = inlined_call_operand.vmem [shape: f32[8,128], index: 3, kind: output, shape index: {}]
  %s4 = sld [smem:[#allocation0]]
  $region22: #{conv_block2d.3} parent=0
    _
  %s6 = ssub.s32 1, %s4
  %s7 = scalar_select 0, %s6, %s4
  // Predicated region
  $region2: #{conv_block2d.3} parent=0 // pred_check
    _
  $region3: #{conv_block2d.3} parent=0 // pred_check_branch
    %9 = sbr.rel (0) target = $region5
  $region4: #{conv_block2d.3} parent=0 // pred_region
    _
  $region5: #{conv_block2d.3} parent=0 // pred_fallthru
    _
  // Predicated region
  $region6: #{conv_block2d.3} parent=0 // pred_check
    _
  $region7: #{conv_block2d.3} parent=0 // pred_check_branch
    %11 = sbr.rel (0) target = $region9
  $region8: #{conv_block2d.3} parent=0 // pred_region
    _
  $region9: #{conv_block2d.3} parent=0 // pred_fallthru
    _
  // Predicated region
  $region10: #{conv_block2d.3} parent=0 // pred_check
    _
  $region11: #{conv_block2d.3} parent=0 // pred_check_branch
    %13 = sbr.rel (0) target = $region13
  $region12: #{conv_block2d.3} parent=0 // pred_region
    _
  $region13: #{conv_block2d.3} parent=0 // pred_fallthru
    _
  %v14 = vld [vmem:[%s1] sm:$0xff]
  %v15 = vld [vmem:[%s2] sm:$0xff]
  %v16 = vld [vmem:[%s0] sm:$0xff]
  %18 = vset.pattern.permute.xlu0 0
  %19 = vperm.xlu0 %18, %v14
  %v20 = vpop.permute.xlu0 %19
  %v22 = vmul.f32 %v16, %v20
  %24 = vset.pattern.permute.xlu0 0
  %25 = vperm.xlu0 %24, %v15
  %v26 = vpop.permute.xlu0 %25
  %v28 = vadd.f32 %v22, %v26
  %v29 = vmax.f32 %v28, 0.0
  %s30 = scalar_lea.vmem %s0, 8
  %v31 = vld [vmem:[%s30] sm:$0xff]
  %v32 = vmul.f32 %v31, %v20
  %v33 = vadd.f32 %v32, %v26
  %v34 = vmax.f32 %v33, 0.0
  %v35 = vmax.f32 %v29, %v34
  %s36 = scalar_lea.vmem %s0, 16
  %v37 = vld [vmem:[%s36] sm:$0xff]
  %v38 = vmul.f32 %v37, %v20
  %v39 = vadd.f32 %v38, %v26
  %v40 = vmax.f32 %v39, 0.0
  %v41 = vmax.f32 %v35, %v40
  %s42 = scalar_lea.vmem %s0, 24
  %v43 = vld [vmem:[%s42] sm:$0xff]
  %v44 = vmul.f32 %v43, %v20
  %v45 = vadd.f32 %v44, %v26
  %v46 = vmax.f32 %v45, 0.0
  %v47 = vmax.f32 %v41, %v46
  %48 = vst [vmem:[%s3] sm:$0xff] %v47
  // Predicated region
  $region14: #{conv_block2d.3} parent=0 // pred_check
    _
  $region15: #{conv_block2d.3} parent=0 // pred_check_branch
    %50 = sbr.rel (0) target = $region17
  $region16: #{conv_block2d.3} parent=0 // pred_region
    _
  $region17: #{conv_block2d.3} parent=0 // pred_fallthru
    _
  // Predicated region
  $region18: #{conv_block2d.3} parent=0 // pred_check
    _
  $region19: #{conv_block2d.3} parent=0 // pred_check_branch
    %52 = sbr.rel (0) target = $region21
  $region20: #{conv_block2d.3} parent=0 // pred_region
    _
  $region21: #{conv_block2d.3} parent=0 // pred_fallthru
    _

// kernel: conv_block2d.2
$region0: #{conv_block2d.2}
  #allocation0 [shape = 'u32[]', space=smem, size = 0x4, offset = 0x4, fixed_abs, tag = 'smem constant byte address 0x4 - core index']
  #allocation1 [shape = 'u32[144,128]{1,0:T(1,128)}', space=vmem, size = 0x12000, scoped, tag = 'internal scratch']
  %s0 = inlined_call_operand.vmem [shape: f32[4,40,128], index: 0, kind: input, shape index: {}]
  %s1 = inlined_call_operand.vmem [shape: f32[8,40], index: 1, kind: input, shape index: {}]
  %s2 = inlined_call_operand.vmem [shape: f32[4,8,128], index: 2, kind: output, shape index: {0}]
  %s3 = inlined_call_operand.vmem [shape: f32[1,8,1], index: 3, kind: output, shape index: {1}]
  %s4 = inlined_call_operand.vmem [shape: f32[1,8,1], index: 4, kind: output, shape index: {2}]
  %5 = xla_tuple %s2, %s3, %s4
  %s6 = sld [smem:[#allocation0]]
  $region34: #{conv_block2d.2} parent=0
    _
  %s8 = ssub.s32 1, %s6
  %s9 = scalar_select 0, %s8, %s6
  // Predicated region
  $region2: #{conv_block2d.2} parent=0 // pred_check
    _
  $region3: #{conv_block2d.2} parent=0 // pred_check_branch
    %11 = sbr.rel (0) target = $region5
  $region4: #{conv_block2d.2} parent=0 // pred_region
    _
  $region5: #{conv_block2d.2} parent=0 // pred_fallthru
    _
  // Predicated region
  $region6: #{conv_block2d.2} parent=0 // pred_check
    _
  $region7: #{conv_block2d.2} parent=0 // pred_check_branch
    %13 = sbr.rel (0) target = $region9
  $region8: #{conv_block2d.2} parent=0 // pred_region
    _
  $region9: #{conv_block2d.2} parent=0 // pred_fallthru
    _
  %v14 = vld [vmem:[%s1] sm:$0xff]
  %v15 = vld [vmem:[%s0] sm:$0xff]
  %v16 = vld [vmem:[%s0 + $0x8] sm:$0xff]
  %v17 = vld [vmem:[%s0 + $0x10] sm:$0xff]
  %v18 = vld [vmem:[%s0 + $0x18] sm:$0xff]
  %v19 = vld [vmem:[%s0 + $0x20] sm:$0xff]
  %vm20 = vcmask 326656
  %v22 = vsel %vm20, %v14, 0
  %24 = vmatprep.subr.mxu0 0.0
  %25 = vmatpush1.msra.mxu0 0.0
  %26 = vmatprep.subr.mxu0 0.0
  %27 = vmatpush1.msra.mxu0 0.0
  %28 = vmatprep.subr.mxu0 0.0
  %29 = vmatpush1.msra.mxu0 0.0
  %30 = vmatprep.subr.mxu0 0.0
  %31 = vmatpush1.msra.mxu0 0.0
  %32 = vmatprep.subr.mxu0 0.0
  %33 = vmatpush1.msra.mxu0 0.0
  %34 = vmatprep.subr.mxu0 0.0
  %35 = vmatpush1.msra.mxu0 0.0
  %36 = vmatprep.subr.mxu0 0.0
  %37 = vmatpush1.msra.mxu0 0.0
  %38 = vmatprep.subr.mxu0 0.0
  %39 = vmatpush1.msra.mxu0 0.0
  %40 = vmatprep.subr.mxu0 0.0
  %41 = vmatpush1.msra.mxu0 0.0
  %42 = vmatprep.subr.mxu0 0.0
  %43 = vmatpush1.msra.mxu0 0.0
  %44 = vmatprep.subr.mxu0 0.0
  %45 = vmatpush1.msra.mxu0 0.0
  %46 = vmatprep.subr.mxu0 0.0
  %47 = vmatpush1.msra.mxu0 %v19
  %48 = vmatprep.subr.mxu0 0.0
  %49 = vmatpush1.msra.mxu0 %v18
  %50 = vmatprep.subr.mxu0 0.0
  %51 = vmatpush1.msra.mxu0 %v17
  %52 = vmatprep.subr.mxu0 0.0
  %53 = vmatpush1.msra.mxu0 %v16
  %54 = vmatprep.subr.mxu0 0.0
  %55 = vmatpush1.msra.mxu0 %v15
  %56 = vmatprep.subr.mxu0 0.0
  %57 = vmatpush2.msra.mxu0 0.0
  %58 = vmatprep.subr.mxu0 0.0
  %59 = vmatpush2.msra.mxu0 0.0
  %60 = vmatprep.subr.mxu0 0.0
  %61 = vmatpush2.msra.mxu0 0.0
  %62 = vmatprep.subr.mxu0 0.0
  %63 = vmatpush2.msra.mxu0 0.0
  %64 = vmatprep.subr.mxu0 0.0
  %65 = vmatpush2.msra.mxu0 0.0
  %66 = vmatprep.subr.mxu0 0.0
  %67 = vmatpush2.msra.mxu0 0.0
  %68 = vmatprep.subr.mxu0 0.0
  %69 = vmatpush2.msra.mxu0 0.0
  %70 = vmatprep.subr.mxu0 0.0
  %71 = vmatpush2.msra.mxu0 0.0
  %72 = vmatprep.subr.mxu0 0.0
  %73 = vmatpush2.msra.mxu0 0.0
  %74 = vmatprep.subr.mxu0 0.0
  %75 = vmatpush2.msra.mxu0 0.0
  %76 = vmatprep.subr.mxu0 0.0
  %77 = vmatpush2.msra.mxu0 0.0
  %78 = vmatprep.subr.mxu0 0.0
  %79 = vmatpush2.msra.mxu0 0.0
  %80 = vmatprep.subr.mxu0 0.0
  %81 = vmatpush2.msra.mxu0 0.0
  %82 = vmatprep.subr.mxu0 0.0
  %83 = vmatpush2.msra.mxu0 0.0
  %84 = vmatprep.subr.mxu0 0.0
  %85 = vmatpush2.msra.mxu0 0.0
  %86 = vmatprep.subr.mxu0 0.0
  %87 = vmatpush2.msra.mxu0 0.0
  %88 = vmatprep.mubr.f32.mxu0 0.0
  %89 = vmatmul.mubr.f32.gmra.mxu0 %v22
  %v90 = vpop.f32.mrf.mxu0
  %v91 = vadd.f32 0.0, %v90
  %v92 = vpop.f32.mrf.mxu0
  %93 = vdwg.mxu0
  %94 = vst [vmem:[%s2] sm:$0xff] %v91
  %95 = vadd.xlane.f32.xlu0 %v91
  %v96 = vpop.xlane.xlu0 %95
  %v97 = vadd.f32 %v96, 0.0
  %v98 = vmul.f32 %v91, %v91
  %99 = vadd.xlane.f32.xlu0 %v98
  %v100 = vpop.xlane.xlu0 %99
  %v101 = vadd.f32 %v100, 0.0
  %s102 = scalar_lea.vmem %s0, 40
  %v103 = vld [vmem:[%s102] sm:$0xff]
  %v104 = vld [vmem:[%s102 + $0x8] sm:$0xff]
  %v105 = vld [vmem:[%s102 + $0x10] sm:$0xff]
  %v106 = vld [vmem:[%s102 + $0x18] sm:$0xff]
  %v107 = vld [vmem:[%s102 + $0x20] sm:$0xff]
  %108 = vmatprep.subr.mxu0 0.0
  %109 = vmatpush1.msra.mxu0 0.0
  %110 = vmatprep.subr.mxu0 0.0
  %111 = vmatpush1.msra.mxu0 0.0
  %112 = vmatprep.subr.mxu0 0.0
  %113 = vmatpush1.msra.mxu0 0.0
  %114 = vmatprep.subr.mxu0 0.0
  %115 = vmatpush1.msra.mxu0 0.0
  %116 = vmatprep.subr.mxu0 0.0
  %117 = vmatpush1.msra.mxu0 0.0
  %118 = vmatprep.subr.mxu0 0.0
  %119 = vmatpush1.msra.mxu0 0.0
  %120 = vmatprep.subr.mxu0 0.0
  %121 = vmatpush1.msra.mxu0 0.0
  %122 = vmatprep.subr.mxu0 0.0
  %123 = vmatpush1.msra.mxu0 0.0
  %124 = vmatprep.subr.mxu0 0.0
  %125 = vmatpush1.msra.mxu0 0.0
  %126 = vmatprep.subr.mxu0 0.0
  %127 = vmatpush1.msra.mxu0 0.0
  %128 = vmatprep.subr.mxu0 0.0
  %129 = vmatpush1.msra.mxu0 0.0
  %130 = vmatprep.subr.mxu0 0.0
  %131 = vmatpush1.msra.mxu0 %v107
  %132 = vmatprep.subr.mxu0 0.0
  %133 = vmatpush1.msra.mxu0 %v106
  %134 = vmatprep.subr.mxu0 0.0
  %135 = vmatpush1.msra.mxu0 %v105
  %136 = vmatprep.subr.mxu0 0.0
  %137 = vmatpush1.msra.mxu0 %v104
  %138 = vmatprep.subr.mxu0 0.0
  %139 = vmatpush1.msra.mxu0 %v103
  %140 = vmatprep.subr.mxu0 0.0
  %141 = vmatpush2.msra.mxu0 0.0
  %142 = vmatprep.subr.mxu0 0.0
  %143 = vmatpush2.msra.mxu0 0.0
  %144 = vmatprep.subr.mxu0 0.0
  %145 = vmatpush2.msra.mxu0 0.0
  %146 = vmatprep.subr.mxu0 0.0
  %147 = vmatpush2.msra.mxu0 0.0
  %148 = vmatprep.subr.mxu0 0.0
  %149 = vmatpush2.msra.mxu0 0.0
  %150 = vmatprep.subr.mxu0 0.0
  %151 = vmatpush2.msra.mxu0 0.0
  %152 = vmatprep.subr.mxu0 0.0
  %153 = vmatpush2.msra.mxu0 0.0
  %154 = vmatprep.subr.mxu0 0.0
  %155 = vmatpush2.msra.mxu0 0.0
  %156 = vmatprep.subr.mxu0 0.0
  %157 = vmatpush2.msra.mxu0 0.0
  %158 = vmatprep.subr.mxu0 0.0
  %159 = vmatpush2.msra.mxu0 0.0
  %160 = vmatprep.subr.mxu0 0.0
  %161 = vmatpush2.msra.mxu0 0.0
  %162 = vmatprep.subr.mxu0 0.0
  %163 = vmatpush2.msra.mxu0 0.0
  %164 = vmatprep.subr.mxu0 0.0
  %165 = vmatpush2.msra.mxu0 0.0
  %166 = vmatprep.subr.mxu0 0.0
  %167 = vmatpush2.msra.mxu0 0.0
  %168 = vmatprep.subr.mxu0 0.0
  %169 = vmatpush2.msra.mxu0 0.0
  %170 = vmatprep.subr.mxu0 0.0
  %171 = vmatpush2.msra.mxu0 0.0
  %172 = vmatprep.mubr.f32.mxu0 0.0
  %173 = vmatmul.mubr.f32.gmra.mxu0 %v22
  %v174 = vpop.f32.mrf.mxu0
  %v175 = vadd.f32 0.0, %v174
  %v176 = vpop.f32.mrf.mxu0
  %177 = vdwg.mxu0
  %s178 = scalar_lea.vmem %s2, 8
  %179 = vst [vmem:[%s178] sm:$0xff] %v175
  %180 = vadd.xlane.f32.xlu0 %v175
  %v181 = vpop.xlane.xlu0 %180
  %v182 = vadd.f32 %v97, %v181
  %v183 = vmul.f32 %v175, %v175
  %184 = vadd.xlane.f32.xlu0 %v183
  %v185 = vpop.xlane.xlu0 %184
  %v186 = vadd.f32 %v101, %v185
  %s187 = scalar_lea.vmem %s0, 80
  %v188 = vld [vmem:[%s187] sm:$0xff]
  %v189 = vld [vmem:[%s187 + $0x8] sm:$0xff]
  %v190 = vld [vmem:[%s187 + $0x10] sm:$0xff]
  %v191 = vld [vmem:[%s187 + $0x18] sm:$0xff]
  %v192 = vld [vmem:[%s187 + $0x20] sm:$0xff]
  %193 = vmatprep.subr.mxu0 0.0
  %194 = vmatpush1.msra.mxu0 0.0
  %195 = vmatprep.subr.mxu0 0.0
  %196 = vmatpush1.msra.mxu0 0.0
  %197 = vmatprep.subr.mxu0 0.0
  %198 = vmatpush1.msra.mxu0 0.0
  %199 = vmatprep.subr.mxu0 0.0
  %200 = vmatpush1.msra.mxu0 0.0
  %201 = vmatprep.subr.mxu0 0.0
  %202 = vmatpush1.msra.mxu0 0.0
  %203 = vmatprep.subr.mxu0 0.0
  %204 = vmatpush1.msra.mxu0 0.0
  %205 = vmatprep.subr.mxu0 0.0
  %206 = vmatpush1.msra.mxu0 0.0
  %207 = vmatprep.subr.mxu0 0.0
  %208 = vmatpush1.msra.mxu0 0.0
  %209 = vmatprep.subr.mxu0 0.0
  %210 = vmatpush1.msra.mxu0 0.0
  %211 = vmatprep.subr.mxu0 0.0
  %212 = vmatpush1.msra.mxu0 0.0
  %213 = vmatprep.subr.mxu0 0.0
  %214 = vmatpush1.msra.mxu0 0.0
  %215 = vmatprep.subr.mxu0 0.0
  %216 = vmatpush1.msra.mxu0 %v192
  %217 = vmatprep.subr.mxu0 0.0
  %218 = vmatpush1.msra.mxu0 %v191
  %219 = vmatprep.subr.mxu0 0.0
  %220 = vmatpush1.msra.mxu0 %v190
  %221 = vmatprep.subr.mxu0 0.0
  %222 = vmatpush1.msra.mxu0 %v189
  %223 = vmatprep.subr.mxu0 0.0
  %224 = vmatpush1.msra.mxu0 %v188
  %225 = vmatprep.subr.mxu0 0.0
  %226 = vmatpush2.msra.mxu0 0.0
  %227 = vmatprep.subr.mxu0 0.0
  %228 = vmatpush2.msra.mxu0 0.0
  %229 = vmatprep.subr.mxu0 0.0
  %230 = vmatpush2.msra.mxu0 0.0
  %231 = vmatprep.subr.mxu0 0.0
  %232 = vmatpush2.msra.mxu0 0.0
  %233 = vmatprep.subr.mxu0 0.0
  %234 = vmatpush2.msra.mxu0 0.0
  %235 = vmatprep.subr.mxu0 0.0
  %236 = vmatpush2.msra.mxu0 0.0
  %237 = vmatprep.subr.mxu0 0.0
  %238 = vmatpush2.msra.mxu0 0.0
  %239 = vmatprep.subr.mxu0 0.0
  %240 = vmatpush2.msra.mxu0 0.0
  %241 = vmatprep.subr.mxu0 0.0
  %242 = vmatpush2.msra.mxu0 0.0
  %243 = vmatprep.subr.mxu0 0.0
  %244 = vmatpush2.msra.mxu0 0.0
  %245 = vmatprep.subr.mxu0 0.0
  %246 = vmatpush2.msra.mxu0 0.0
  %247 = vmatprep.subr.mxu0 0.0
  %248 = vmatpush2.msra.mxu0 0.0
  %249 = vmatprep.subr.mxu0 0.0
  %250 = vmatpush2.msra.mxu0 0.0
  %251 = vmatprep.subr.mxu0 0.0
  %252 = vmatpush2.msra.mxu0 0.0
  %253 = vmatprep.subr.mxu0 0.0
  %254 = vmatpush2.msra.mxu0 0.0
  %255 = vmatprep.subr.mxu0 0.0
  %256 = vmatpush2.msra.mxu0 0.0
  %257 = vmatprep.mubr.f32.mxu0 0.0
  %258 = vmatmul.mubr.f32.gmra.mxu0 %v22
  %v259 = vpop.f32.mrf.mxu0
  %v260 = vadd.f32 0.0, %v259
  %v261 = vpop.f32.mrf.mxu0
  %262 = vdwg.mxu0
  %s263 = scalar_lea.vmem %s2, 16
  %264 = vst [vmem:[%s263] sm:$0xff] %v260
  %265 = vadd.xlane.f32.xlu0 %v260
  %v266 = vpop.xlane.xlu0 %265
  %v267 = vadd.f32 %v182, %v266
  %v268 = vmul.f32 %v260, %v260
  %269 = vadd.xlane.f32.xlu0 %v268
  %v270 = vpop.xlane.xlu0 %269
  %v271 = vadd.f32 %v186, %v270
  %s272 = scalar_lea.vmem %s0, 120
  %v273 = vld [vmem:[%s272] sm:$0xff]
  %v274 = vld [vmem:[%s272 + $0x8] sm:$0xff]
  %v275 = vld [vmem:[%s272 + $0x10] sm:$0xff]
  %v276 = vld [vmem:[%s272 + $0x18] sm:$0xff]
  %v277 = vld [vmem:[%s272 + $0x20] sm:$0xff]
  %278 = vmatprep.subr.mxu0 0.0
  %279 = vmatpush1.msra.mxu0 0.0
  %280 = vmatprep.subr.mxu0 0.0
  %281 = vmatpush1.msra.mxu0 0.0
  %282 = vmatprep.subr.mxu0 0.0
  %283 = vmatpush1.msra.mxu0 0.0
  %284 = vmatprep.subr.mxu0 0.0
  %285 = vmatpush1.msra.mxu0 0.0
  %286 = vmatprep.subr.mxu0 0.0
  %287 = vmatpush1.msra.mxu0 0.0
  %288 = vmatprep.subr.mxu0 0.0
  %289 = vmatpush1.msra.mxu0 0.0
  %290 = vmatprep.subr.mxu0 0.0
  %291 = vmatpush1.msra.mxu0 0.0
  %292 = vmatprep.subr.mxu0 0.0
  %293 = vmatpush1.msra.mxu0 0.0
  %294 = vmatprep.subr.mxu0 0.0
  %295 = vmatpush1.msra.mxu0 0.0
  %296 = vmatprep.subr.mxu0 0.0
  %297 = vmatpush1.msra.mxu0 0.0
  %298 = vmatprep.subr.mxu0 0.0
  %299 = vmatpush1.msra.mxu0 0.0
  %300 = vmatprep.subr.mxu0 0.0
  %301 = vmatpush1.msra.mxu0 %v277
  %302 = vmatprep.subr.mxu0 0.0
  %303 = vmatpush1.msra.mxu0 %v276
  %304 = vmatprep.subr.mxu0 0.0
  %305 = vmatpush1.msra.mxu0 %v275
  %306 = vmatprep.subr.mxu0 0.0
  %307 = vmatpush1.msra.mxu0 %v274
  %308 = vmatprep.subr.mxu0 0.0
  %309 = vmatpush1.msra.mxu0 %v273
  %310 = vmatprep.subr.mxu0 0.0
  %311 = vmatpush2.msra.mxu0 0.0
  %312 = vmatprep.subr.mxu0 0.0
  %313 = vmatpush2.msra.mxu0 0.0
  %314 = vmatprep.subr.mxu0 0.0
  %315 = vmatpush2.msra.mxu0 0.0
  %316 = vmatprep.subr.mxu0 0.0
  %317 = vmatpush2.msra.mxu0 0.0
  %318 = vmatprep.subr.mxu0 0.0
  %319 = vmatpush2.msra.mxu0 0.0
  %320 = vmatprep.subr.mxu0 0.0
  %321 = vmatpush2.msra.mxu0 0.0
  %322 = vmatprep.subr.mxu0 0.0
  %323 = vmatpush2.msra.mxu0 0.0
  %324 = vmatprep.subr.mxu0 0.0
  %325 = vmatpush2.msra.mxu0 0.0
  %326 = vmatprep.subr.mxu0 0.0
  %327 = vmatpush2.msra.mxu0 0.0
  %328 = vmatprep.subr.mxu0 0.0
  %329 = vmatpush2.msra.mxu0 0.0
  %330 = vmatprep.subr.mxu0 0.0
  %331 = vmatpush2.msra.mxu0 0.0
  %332 = vmatprep.subr.mxu0 0.0
  %333 = vmatpush2.msra.mxu0 0.0
  %334 = vmatprep.subr.mxu0 0.0
  %335 = vmatpush2.msra.mxu0 0.0
  %336 = vmatprep.subr.mxu0 0.0
  %337 = vmatpush2.msra.mxu0 0.0
  %338 = vmatprep.subr.mxu0 0.0
  %339 = vmatpush2.msra.mxu0 0.0
  %340 = vmatprep.subr.mxu0 0.0
  %341 = vmatpush2.msra.mxu0 0.0
  %342 = vmatprep.mubr.f32.mxu0 0.0
  %343 = vmatmul.mubr.f32.gmra.mxu0 %v22
  %v344 = vpop.f32.mrf.mxu0
  %v345 = vadd.f32 0.0, %v344
  %v346 = vpop.f32.mrf.mxu0
  %347 = vdwg.mxu0
  %s348 = scalar_lea.vmem %s2, 24
  %349 = vst [vmem:[%s348] sm:$0xff] %v345
  %350 = vadd.xlane.f32.xlu0 %v345
  %v351 = vpop.xlane.xlu0 %350
  %v352 = vadd.f32 %v267, %v351
  %v353 = vmul.f32 %v345, %v345
  %354 = vadd.xlane.f32.xlu0 %v353
  %v355 = vpop.xlane.xlu0 %354
  %v356 = vadd.f32 %v271, %v355
  %vm357 = vcmask 7168
  %358 = vst.msk [vmem:[%s3] sm:$0xff] %vm357, %v352
  %359 = vst.msk [vmem:[%s4] sm:$0xff] %vm357, %v356
  // Predicated region
  $region10: #{conv_block2d.2} parent=0 // pred_check
    _
  $region11: #{conv_block2d.2} parent=0 // pred_check_branch
    %361 = sbr.rel (0) target = $region13
  $region12: #{conv_block2d.2} parent=0 // pred_region
    _
  $region13: #{conv_block2d.2} parent=0 // pred_fallthru
    _
  // Predicated region
  $region14: #{conv_block2d.2} parent=0 // pred_check
    _
  $region15: #{conv_block2d.2} parent=0 // pred_check_branch
    %363 = sbr.rel (0) target = $region17
  $region16: #{conv_block2d.2} parent=0 // pred_region
    _
  $region17: #{conv_block2d.2} parent=0 // pred_fallthru
    _
  // Predicated region
  $region18: #{conv_block2d.2} parent=0 // pred_check
    _
  $region19: #{conv_block2d.2} parent=0 // pred_check_branch
    %365 = sbr.rel (0) target = $region21
  $region20: #{conv_block2d.2} parent=0 // pred_region
    _
  $region21: #{conv_block2d.2} parent=0 // pred_fallthru
    _
  // Predicated region
  $region22: #{conv_block2d.2} parent=0 // pred_check
    _
  $region23: #{conv_block2d.2} parent=0 // pred_check_branch
    %367 = sbr.rel (0) target = $region25
  $region24: #{conv_block2d.2} parent=0 // pred_region
    _
  $region25: #{conv_block2d.2} parent=0 // pred_fallthru
    _
  // Predicated region
  $region26: #{conv_block2d.2} parent=0 // pred_check
    _
  $region27: #{conv_block2d.2} parent=0 // pred_check_branch
    %369 = sbr.rel (0) target = $region29
  $region28: #{conv_block2d.2} parent=0 // pred_region
    _
  $region29: #{conv_block2d.2} parent=0 // pred_fallthru
    _
  // Predicated region
  $region30: #{conv_block2d.2} parent=0 // pred_check
    _
  $region31: #{conv_block2d.2} parent=0 // pred_check_branch
    %371 = sbr.rel (0) target = $region33
  $region32: #{conv_block2d.2} parent=0 // pred_region
    _
  $region33: #{conv_block2d.2} parent=0 // pred_fallthru
    _

</llo_original>
